<compile_context>
chip_gen: v5e
topology: v5e:2x2
jax: 0.10.0
libtpu: 0.0.40
codegen_flags: <defaults>
</compile_context>

<pallas_src>
import jax
import jax.numpy as jnp
from jax.experimental import pallas as pl
from jax.experimental.pallas import tpu as pltpu


def mlp_kernel(x_ref, w1_ref, b1_ref, w2_ref, b2_ref, o_ref):
    # x arrives f32; the bf16 cast is a free VPU op in this HBM-bound regime.
    x = x_ref[...].astype(jnp.bfloat16)                       # (tb, 20)
    # hidden = relu(x @ W1 + b1): bf16 on the MXU, f32 accumulate + epilogue.
    h = jnp.dot(x, w1_ref[...], preferred_element_type=jnp.float32)
    h = jnp.maximum(h + b1_ref[...], 0.0)                     # (tb, 256) f32
    # out = h @ W2 + b2: bf16 MXU feed, f32 accumulate.  Unpadded 10-wide store.
    y = jnp.dot(h.astype(w2_ref.dtype), w2_ref[...],
                preferred_element_type=jnp.float32)
    o_ref[...] = y + b2_ref[...]                              # (tb, 10) f32


def mlp_forward(x, w1, b1, w2, b2, *, tb_target=2048):
    """y = relu(x @ W1 + b1) @ W2 + b2 with x:(B,20), W1:(20,256), W2:(256,10)."""
    B, in_dim = x.shape
    hidden = w1.shape[1]
    out_dim = w2.shape[1]

    # Batch tile: large to amortize the ~0.35us/grid-step overhead, but capped at
    # ~ceil(B/2) (rounded to a multiple of 8) so small batches stay cheap and a
    # large batch always yields >=2 grid steps for the two v7x TensorCores.
    half = pl.cdiv(B, 2)
    tb = min(tb_target, max(8, ((half + 7) // 8) * 8))
    n_tiles = pl.cdiv(B, tb)

    # Low-precision weights for the MXU (tiny, one-time cast); biases stay f32.
    w1_lp = w1.astype(jnp.bfloat16)
    w2_lp = w2.astype(jnp.bfloat16)
    b1_f32 = b1.astype(jnp.float32).reshape(1, hidden)
    b2_f32 = b2.astype(jnp.float32).reshape(1, out_dim)

    itemsize = 4
    cost = pl.CostEstimate(
        flops=2 * B * hidden * (in_dim + out_dim),
        transcendentals=0,
        bytes_accessed=(B * in_dim * itemsize            # x read (f32)
                        + B * out_dim * itemsize         # out write (f32)
                        + (in_dim * hidden + hidden * out_dim) * 2
                        + (hidden + out_dim) * itemsize))

    out = pl.pallas_call(
        mlp_kernel,
        out_shape=jax.ShapeDtypeStruct((B, out_dim), jnp.float32),
        grid=(n_tiles,),
        in_specs=[
            pl.BlockSpec((tb, in_dim), lambda i: (i, 0)),      # x tile per step
            pl.BlockSpec((in_dim, hidden), lambda i: (0, 0)),  # weights resident
            pl.BlockSpec((1, hidden), lambda i: (0, 0)),
            pl.BlockSpec((hidden, out_dim), lambda i: (0, 0)),
            pl.BlockSpec((1, out_dim), lambda i: (0, 0)),
        ],
        out_specs=pl.BlockSpec((tb, out_dim), lambda i: (i, 0)),
        compiler_params=pltpu.CompilerParams(
            dimension_semantics=("parallel",)),                # megacore on v7x
        cost_estimate=cost,
    )(x, w1_lp, b1_f32, w2_lp, b2_f32)

    return out  # already exactly (B, 10) f32 — no post-kernel slice pass


def init_params(key, in_dim=20, hidden_dim=256, out_dim=10, dtype=jnp.float32):
    # Deterministic init mimicking nn.Linear default: U(-1/sqrt(fan_in), 1/sqrt(fan_in)).
    k1, k2, k3, k4 = jax.random.split(key, 4)
    lim1 = 1.0 / jnp.sqrt(in_dim)
    lim2 = 1.0 / jnp.sqrt(hidden_dim)
    w1 = jax.random.uniform(k1, (in_dim, hidden_dim), dtype, -lim1, lim1)
    b1 = jax.random.uniform(k2, (1, hidden_dim), dtype, -lim1, lim1)
    w2 = jax.random.uniform(k3, (hidden_dim, out_dim), dtype, -lim2, lim2)
    b2 = jax.random.uniform(k4, (1, out_dim), dtype, -lim2, lim2)
    return w1, b1, w2, b2


if __name__ == "__main__":
    key = jax.random.PRNGKey(0)
    kx, kp = jax.random.split(key)

    batch, in_dim = 2, 20
    x = jax.random.normal(kx, (batch, in_dim), jnp.float32)
    w1, b1, w2, b2 = init_params(kp, in_dim=in_dim)

    out = mlp_forward(x, w1, b1, w2, b2)
    jax.block_until_ready(out)
    assert out.shape == (batch, 10)

    # Reference in plain JAX mimicking the kernel's bf16-in / f32-accumulate math.
    xr = x.astype(jnp.bfloat16).astype(jnp.float32)
    w1r = w1.astype(jnp.bfloat16).astype(jnp.float32)
    w2r = w2.astype(jnp.bfloat16).astype(jnp.float32)
    hr = jnp.maximum(xr @ w1r + b1, 0.0)
    ref = hr.astype(jnp.bfloat16).astype(jnp.float32) @ w2r + b2
    assert jnp.allclose(out, ref, atol=1e-2, rtol=1e-2)

    print("KERNEL_OK")
</pallas_src>

<mosaic_0001>
module attributes {stable_mosaic.version = 11 : i64} {
  func.func @mlp_kernel(%arg0: i32, %arg1: memref<8x20xf32, #tpu.memory_space<vmem>>, %arg2: memref<20x256xbf16, #tpu.memory_space<vmem>>, %arg3: memref<1x256xf32, #tpu.memory_space<vmem>>, %arg4: memref<256x10xbf16, #tpu.memory_space<vmem>>, %arg5: memref<1x10xf32, #tpu.memory_space<vmem>>, %arg6: memref<8x10xf32, #tpu.memory_space<vmem>>) attributes {dimension_semantics = [#tpu.dimension_semantics<parallel>], iteration_bounds = array<i64: 1>, scalar_prefetch = 0 : i64, scratch_operands = 0 : i64, tpu.core_type = #tpu.core_type<tc>, window_params = [{transform_indices = @transform_0, window_bounds = array<i64: 8, 20>}, {pipeline_mode = #tpu.pipeline_mode<synchronous>, transform_indices = @transform_1, window_bounds = array<i64: 20, 256>}, {pipeline_mode = #tpu.pipeline_mode<synchronous>, transform_indices = @transform_2, window_bounds = array<i64: 1, 256>}, {pipeline_mode = #tpu.pipeline_mode<synchronous>, transform_indices = @transform_3, window_bounds = array<i64: 256, 10>}, {pipeline_mode = #tpu.pipeline_mode<synchronous>, transform_indices = @transform_4, window_bounds = array<i64: 1, 10>}, {transform_indices = @transform_5, window_bounds = array<i64: 8, 10>}]} {
    %c0 = arith.constant 0 : index
    %c0_0 = arith.constant 0 : index
    %0 = vector.load %arg1[%c0, %c0_0] : memref<8x20xf32, #tpu.memory_space<vmem>>, vector<8x20xf32>
    %1 = arith.truncf %0 : vector<8x20xf32> to vector<8x20xbf16>
    %c0_1 = arith.constant 0 : index
    %c0_2 = arith.constant 0 : index
    %2 = vector.load %arg2[%c0_1, %c0_2] : memref<20x256xbf16, #tpu.memory_space<vmem>>, vector<20x256xbf16>
    %cst = arith.constant dense<0.000000e+00> : vector<8x256xf32>
    %3 = tpu.matmul %1, %2, %cst {dimension_numbers = #tpu.dot_dimension_numbers<[1], [0], [0], [1], [0, 0, 1, 1], [], []>} : vector<8x20xbf16>, vector<20x256xbf16>, vector<8x256xf32> -> vector<8x256xf32>
    %c0_3 = arith.constant 0 : index
    %c0_4 = arith.constant 0 : index
    %4 = vector.load %arg3[%c0_3, %c0_4] : memref<1x256xf32, #tpu.memory_space<vmem>>, vector<1x256xf32>
    %5 = vector.broadcast %4 : vector<1x256xf32> to vector<8x256xf32>
    %6 = arith.addf %3, %5 : vector<8x256xf32>
    %cst_5 = arith.constant 0.000000e+00 : f32
    %7 = vector.broadcast %cst_5 : f32 to vector<8x256xf32>
    %8 = arith.maximumf %6, %7 : vector<8x256xf32>
    %9 = arith.truncf %8 : vector<8x256xf32> to vector<8x256xbf16>
    %c0_6 = arith.constant 0 : index
    %c0_7 = arith.constant 0 : index
    %10 = vector.load %arg4[%c0_6, %c0_7] : memref<256x10xbf16, #tpu.memory_space<vmem>>, vector<256x10xbf16>
    %cst_8 = arith.constant dense<0.000000e+00> : vector<8x10xf32>
    %11 = tpu.matmul %9, %10, %cst_8 {dimension_numbers = #tpu.dot_dimension_numbers<[1], [0], [0], [1], [0, 0, 1, 1], [], []>} : vector<8x256xbf16>, vector<256x10xbf16>, vector<8x10xf32> -> vector<8x10xf32>
    %c0_9 = arith.constant 0 : index
    %c0_10 = arith.constant 0 : index
    %12 = vector.load %arg5[%c0_9, %c0_10] : memref<1x10xf32, #tpu.memory_space<vmem>>, vector<1x10xf32>
    %13 = vector.broadcast %12 : vector<1x10xf32> to vector<8x10xf32>
    %14 = arith.addf %11, %13 : vector<8x10xf32>
    %c0_11 = arith.constant 0 : index
    %c0_12 = arith.constant 0 : index
    %15 = vector.load %arg6[%c0_11, %c0_12] : memref<8x10xf32, #tpu.memory_space<vmem>>, vector<8x10xf32>
    tpu.vector_store %arg6[%c0_11, %c0_12], %14 {strides = array<i32>} : memref<8x10xf32, #tpu.memory_space<vmem>>, vector<8x10xf32>,
    return
  }
  func.func @transform_0(%arg0: i32) -> (i32, i32) {
    %c0_i32 = arith.constant 0 : i32
    %c0_i32_0 = arith.constant 0 : i32
    return %arg0, %c0_i32 : i32, i32
  }
  func.func @transform_1(%arg0: i32) -> (i32, i32) {
    %c0_i32 = arith.constant 0 : i32
    %c0_i32_0 = arith.constant 0 : i32
    %c0_i32_1 = arith.constant 0 : i32
    return %c0_i32, %c0_i32_0 : i32, i32
  }
  func.func @transform_2(%arg0: i32) -> (i32, i32) {
    %c0_i32 = arith.constant 0 : i32
    %c0_i32_0 = arith.constant 0 : i32
    %c0_i32_1 = arith.constant 0 : i32
    return %c0_i32, %c0_i32_0 : i32, i32
  }
  func.func @transform_3(%arg0: i32) -> (i32, i32) {
    %c0_i32 = arith.constant 0 : i32
    %c0_i32_0 = arith.constant 0 : i32
    %c0_i32_1 = arith.constant 0 : i32
    return %c0_i32, %c0_i32_0 : i32, i32
  }
  func.func @transform_4(%arg0: i32) -> (i32, i32) {
    %c0_i32 = arith.constant 0 : i32
    %c0_i32_0 = arith.constant 0 : i32
    %c0_i32_1 = arith.constant 0 : i32
    return %c0_i32, %c0_i32_0 : i32, i32
  }
  func.func @transform_5(%arg0: i32) -> (i32, i32) {
    %c0_i32 = arith.constant 0 : i32
    %c0_i32_0 = arith.constant 0 : i32
    return %arg0, %c0_i32 : i32, i32
  }
}

</mosaic_0001>

<llo_original>
// kernel: tpu_custom_call.1
$region0: #{tpu_custom_call.1}
  #allocation0 [shape = 'u32[]', space=smem, size = 0x4, offset = 0x4, fixed_abs, tag = 'smem constant byte address 0x4 - core index']
  #allocation1 [shape = 'u32[72,128]{1,0:T(1,128)}', space=vmem, size = 0x9000, scoped, tag = 'internal scratch']
  %s0 = inlined_call_operand.vmem [shape: f32[2,20], index: 0, kind: input, shape index: {}]
  %s1 = inlined_call_operand.vmem [shape: bf16[20,256], index: 1, kind: input, shape index: {}]
  %s2 = inlined_call_operand.vmem [shape: f32[1,256], index: 2, kind: input, shape index: {}]
  %s3 = inlined_call_operand.vmem [shape: bf16[256,10], index: 3, kind: input, shape index: {}]
  %s4 = inlined_call_operand.vmem [shape: f32[1,10], index: 4, kind: input, shape index: {}]
  %s5 = inlined_call_operand.hbm [shape: f32[2,10], index: 5, kind: output, shape index: {}]
  %s6 = sld [smem:[#allocation0]]
  $region30: #{tpu_custom_call.1} parent=0
    _
  %s8 = ssub.s32 1, %s6
  %s9 = scalar_select 0, %s8, %s6
  $region1: #{tpu_custom_call.1} parent=0
    #allocation2 [shape = 'u8[4096]{0}', space=vmem, size = 0x1000, scoped, tag = 'output window, operand 0, single buffered']
    #allocation3 [shape = 's32[1]{0}', space=sflag, size = 0x4, scoped, tag = 'scoped memory for tpu_custom_call.1']
    %10 = vsyncpa [#allocation3], 0
    // Predicated region
    $region2: #{tpu_custom_call.1} parent=1 // pred_check
      _
    $region3: #{tpu_custom_call.1} parent=1 // pred_check_branch
      %12 = sbr.rel (0) target = $region5
    $region4: #{tpu_custom_call.1} parent=1 // pred_region
      _
    $region5: #{tpu_custom_call.1} parent=1 // pred_fallthru
      _
    // Predicated region
    $region6: #{tpu_custom_call.1} parent=1 // pred_check
      _
    $region7: #{tpu_custom_call.1} parent=1 // pred_check_branch
      %14 = sbr.rel (0) target = $region9
    $region8: #{tpu_custom_call.1} parent=1 // pred_region
      _
    $region9: #{tpu_custom_call.1} parent=1 // pred_fallthru
      _
    // Predicated region
    $region10: #{tpu_custom_call.1} parent=1 // pred_check
      _
    $region11: #{tpu_custom_call.1} parent=1 // pred_check_branch
      %16 = sbr.rel (0) target = $region13
    $region12: #{tpu_custom_call.1} parent=1 // pred_region
      _
    $region13: #{tpu_custom_call.1} parent=1 // pred_fallthru
      _
    // Predicated region
    $region14: #{tpu_custom_call.1} parent=1 // pred_check
      _
    $region15: #{tpu_custom_call.1} parent=1 // pred_check_branch
      %18 = sbr.rel (0) target = $region17
    $region16: #{tpu_custom_call.1} parent=1 // pred_region
      _
    $region17: #{tpu_custom_call.1} parent=1 // pred_fallthru
      _
    // Predicated region
    $region18: #{tpu_custom_call.1} parent=1 // pred_check
      _
    $region19: #{tpu_custom_call.1} parent=1 // pred_check_branch
      %20 = sbr.rel (0) target = $region21
    $region20: #{tpu_custom_call.1} parent=1 // pred_region
      _
    $region21: #{tpu_custom_call.1} parent=1 // pred_fallthru
      _
    %v22 = vld [vmem:[%s0] sm:$0xff]
    %v23 = vpack.c.bf16 %v22, %v22
    %v24 = vld [vmem:[%s1] sm:$0xff]
    %v25 = vld [vmem:[%s1 + $0x8] sm:$0xff]
    %v26 = vld [vmem:[%s1 + $0x10] sm:$0x33]
    %v27 = vld [vmem:[%s2] sm:$0x3]
    %v29 = vperm.slane %v27, 0
    %v30 = vperm.slane %v27, 1
    %v36 = vunpack.c.l.b16 %v24
    %v37 = vunpack.c.h.b16 %v24
    %v38 = vunpack.c.l.b16 %v25
    %v39 = vunpack.c.h.b16 %v25
    %v40 = vunpack.c.l.b16 %v26
    %v41 = vunpack.c.h.b16 %v26
    %v42 = vpack.c.b16 %v38, %v36
    %v43 = vpack.c.b16 %v39, %v37
    %v44 = vpack.c.b16 %v40, %v40
    %v45 = vpack.c.b16 %v41, %v41
    %vm48 = vcmask 162816
    %v50 = vsel %vm48, %v23, 0
    %vm52 = vcmask 1041408
    %v54 = vsel %vm52, %v44, 0
    %v57 = vsel %vm52, %v45, 0
    %59 = vmatpush.bf16.msra.mxu0 0
    %60 = vmatpush.bf16.msra.mxu0 0
    %61 = vmatpush.bf16.msra.mxu0 0
    %62 = vmatpush.bf16.msra.mxu0 0
    %63 = vmatpush.bf16.msra.mxu0 0
    %64 = vmatpush.bf16.msra.mxu0 0
    %65 = vmatpush.bf16.msra.mxu0 %v54
    %66 = vmatpush.bf16.msra.mxu0 %v42
    %67 = vmatmul.bf16.gmra.mxu0 %v50
    %v68 = vpop.f32.mrf.mxu0
    %v69 = vadd.f32 %v29, %v68
    %v70 = vpop.f32.mrf.mxu0
    %71 = vdwg.mxu0
    %72 = vmatpush.bf16.msra.mxu0 0
    %73 = vmatpush.bf16.msra.mxu0 0
    %74 = vmatpush.bf16.msra.mxu0 0
    %75 = vmatpush.bf16.msra.mxu0 0
    %76 = vmatpush.bf16.msra.mxu0 0
    %77 = vmatpush.bf16.msra.mxu0 0
    %78 = vmatpush.bf16.msra.mxu0 %v57
    %79 = vmatpush.bf16.msra.mxu0 %v43
    %80 = vmatmul.bf16.gmra.mxu0 %v50
    %v81 = vpop.f32.mrf.mxu0
    %v82 = vadd.f32 %v30, %v81
    %v83 = vpop.f32.mrf.mxu0
    %84 = vdwg.mxu0
    %v85 = vmax.f32 %v69, 0.0
    %v86 = vmax.f32 %v82, 0.0
    %v87 = vpack.c.bf16 %v85, %v85
    %v88 = vpack.c.bf16 %v86, %v86
    %v89 = vld [vmem:[%s3] sm:$0xf]
    %v90 = vld [vmem:[%s3 + $0x4] sm:$0xf]
    %v91 = vld [vmem:[%s3 + $0x8] sm:$0xf]
    %v92 = vld [vmem:[%s3 + $0xc] sm:$0xf]
    %v93 = vld [vmem:[%s3 + $0x10] sm:$0xf]
    %v94 = vld [vmem:[%s3 + $0x14] sm:$0xf]
    %v95 = vld [vmem:[%s3 + $0x18] sm:$0xf]
    %v96 = vld [vmem:[%s3 + $0x1c] sm:$0xf]
    %v97 = vld [vmem:[%s3 + $0x20] sm:$0xf]
    %v98 = vld [vmem:[%s3 + $0x24] sm:$0xf]
    %v99 = vld [vmem:[%s3 + $0x28] sm:$0xf]
    %v100 = vld [vmem:[%s3 + $0x2c] sm:$0xf]
    %v101 = vld [vmem:[%s3 + $0x30] sm:$0xf]
    %v102 = vld [vmem:[%s3 + $0x34] sm:$0xf]
    %v103 = vld [vmem:[%s3 + $0x38] sm:$0xf]
    %v104 = vld [vmem:[%s3 + $0x3c] sm:$0xf]
    %v105 = vld [vmem:[%s3 + $0x40] sm:$0xf]
    %v106 = vld [vmem:[%s3 + $0x44] sm:$0xf]
    %v107 = vld [vmem:[%s3 + $0x48] sm:$0xf]
    %v108 = vld [vmem:[%s3 + $0x4c] sm:$0xf]
    %v109 = vld [vmem:[%s3 + $0x50] sm:$0xf]
    %v110 = vld [vmem:[%s3 + $0x54] sm:$0xf]
    %v111 = vld [vmem:[%s3 + $0x58] sm:$0xf]
    %v112 = vld [vmem:[%s3 + $0x5c] sm:$0xf]
    %v113 = vld [vmem:[%s3 + $0x60] sm:$0xf]
    %v114 = vld [vmem:[%s3 + $0x64] sm:$0xf]
    %v115 = vld [vmem:[%s3 + $0x68] sm:$0xf]
    %v116 = vld [vmem:[%s3 + $0x6c] sm:$0xf]
    %v117 = vld [vmem:[%s3 + $0x70] sm:$0xf]
    %v118 = vld [vmem:[%s3 + $0x74] sm:$0xf]
    %v119 = vld [vmem:[%s3 + $0x78] sm:$0xf]
    %v120 = vld [vmem:[%s3 + $0x7c] sm:$0xf]
    %v121 = vld [vmem:[%s4] sm:$0x1]
    %v123 = vperm.slane %v121, 0
    %v157 = vunpack.c.l.b16 %v89
    %v158 = vunpack.c.l.b16 %v90
    %v159 = vunpack.c.l.b16 %v91
    %v160 = vunpack.c.l.b16 %v92
    %v161 = vunpack.c.l.b16 %v93
    %v162 = vunpack.c.l.b16 %v94
    %v163 = vunpack.c.l.b16 %v95
    %v164 = vunpack.c.l.b16 %v96
    %v165 = vunpack.c.l.b16 %v97
    %v166 = vunpack.c.l.b16 %v98
    %v167 = vunpack.c.l.b16 %v99
    %v168 = vunpack.c.l.b16 %v100
    %v169 = vunpack.c.l.b16 %v101
    %v170 = vunpack.c.l.b16 %v102
    %v171 = vunpack.c.l.b16 %v103
    %v172 = vunpack.c.l.b16 %v104
    %v173 = vunpack.c.l.b16 %v105
    %v174 = vunpack.c.l.b16 %v106
    %v175 = vunpack.c.l.b16 %v107
    %v176 = vunpack.c.l.b16 %v108
    %v177 = vunpack.c.l.b16 %v109
    %v178 = vunpack.c.l.b16 %v110
    %v179 = vunpack.c.l.b16 %v111
    %v180 = vunpack.c.l.b16 %v112
    %v181 = vunpack.c.l.b16 %v113
    %v182 = vunpack.c.l.b16 %v114
    %v183 = vunpack.c.l.b16 %v115
    %v184 = vunpack.c.l.b16 %v116
    %v185 = vunpack.c.l.b16 %v117
    %v186 = vunpack.c.l.b16 %v118
    %v187 = vunpack.c.l.b16 %v119
    %v188 = vunpack.c.l.b16 %v120
    %v189 = vpack.c.b16 %v158, %v157
    %v190 = vpack.c.b16 %v160, %v159
    %v191 = vpack.c.b16 %v162, %v161
    %v192 = vpack.c.b16 %v164, %v163
    %v193 = vpack.c.b16 %v166, %v165
    %v194 = vpack.c.b16 %v168, %v167
    %v195 = vpack.c.b16 %v170, %v169
    %v196 = vpack.c.b16 %v172, %v171
    %v197 = vpack.c.b16 %v174, %v173
    %v198 = vpack.c.b16 %v176, %v175
    %v199 = vpack.c.b16 %v178, %v177
    %v200 = vpack.c.b16 %v180, %v179
    %v201 = vpack.c.b16 %v182, %v181
    %v202 = vpack.c.b16 %v184, %v183
    %v203 = vpack.c.b16 %v186, %v185
    %v204 = vpack.c.b16 %v188, %v187
    %221 = vmatpush.bf16.msra.mxu0 %v196
    %222 = vmatpush.bf16.msra.mxu0 %v195
    %223 = vmatpush.bf16.msra.mxu0 %v194
    %224 = vmatpush.bf16.msra.mxu0 %v193
    %225 = vmatpush.bf16.msra.mxu0 %v192
    %226 = vmatpush.bf16.msra.mxu0 %v191
    %227 = vmatpush.bf16.msra.mxu0 %v190
    %228 = vmatpush.bf16.msra.mxu0 %v189
    %229 = vmatmul.bf16.gmra.mxu0 %v87
    %v230 = vpop.f32.mrf.mxu0
    %v231 = vadd.f32 %v123, %v230
    %v232 = vpop.f32.mrf.mxu0
    %233 = vdwg.mxu0
    %234 = vmatpush.bf16.msra.mxu0 %v204
    %235 = vmatpush.bf16.msra.mxu0 %v203
    %236 = vmatpush.bf16.msra.mxu0 %v202
    %237 = vmatpush.bf16.msra.mxu0 %v201
    %238 = vmatpush.bf16.msra.mxu0 %v200
    %239 = vmatpush.bf16.msra.mxu0 %v199
    %240 = vmatpush.bf16.msra.mxu0 %v198
    %241 = vmatpush.bf16.msra.mxu0 %v197
    %242 = vmatmul.bf16.gmra.mxu0 %v88
    %v243 = vpop.f32.mrf.mxu0
    %v244 = vadd.f32 %v231, %v243
    %v245 = vpop.f32.mrf.mxu0
    %246 = vdwg.mxu0
    %vm247 = vcmask 80896
    %248 = vst.msk [vmem:[#allocation2] sm:$0xff] %vm247, %v244
    // Predicated region
    $region22: #{tpu_custom_call.1} parent=1 // pred_check
      _
    $region23: #{tpu_custom_call.1} parent=1 // pred_check_branch
      %250 = sbr.rel (0) target = $region25
    $region24: #{tpu_custom_call.1} parent=1 // pred_region
      %252 = vsyncadd [#allocation3], 96
      %s253 = sshll.u32 [#allocation2], 4
      %s254 = int_to_ptr.vmem [resolvable:$true] %s253
      %s255 = sshll.u32 %s5, 4
      %s256 = int_to_ptr.hbm [resolvable:$true] %s255
      %261 = dma.vmem_to_hbm [thread:$0]  %s254, 32, %s256, [#allocation3], 32, 32, 2
    $region25: #{tpu_custom_call.1} parent=1 // pred_fallthru
      _
    // Predicated region
    $region26: #{tpu_custom_call.1} parent=1 // pred_check
      _
    $region27: #{tpu_custom_call.1} parent=1 // pred_check_branch
      %263 = sbr.rel (0) target = $region29
    $region28: #{tpu_custom_call.1} parent=1 // pred_region
      %265 = dma.done [#allocation3], 128
    $region29: #{tpu_custom_call.1} parent=1 // pred_fallthru
      _
    %266 = vsyncpa [#allocation3], 1

</llo_original>
